<compile_context>
chip_gen: v7x
topology: tpu7x:2x2x1
jax: 0.10.0
libtpu: 0.0.40
codegen_flags: <defaults>
</compile_context>

<pallas_src>
import math

import jax
import jax.numpy as jnp
from jax.experimental import pallas as pl
from jax.experimental.pallas import tpu as pltpu

_LOG_SQRT_2PI = 0.5 * math.log(2.0 * math.pi)


def _dot(a, b):
    # bf16 MXU matmul with f32 accumulation (used by the pure-JAX reference).
    return jnp.dot(a.astype(jnp.bfloat16), b.astype(jnp.bfloat16),
                   preferred_element_type=jnp.float32)


def actor_kernel(
    xp_ref,    # (T*Bp, 4H) f32   hoisted LSTM input projection (i/f/o cols pre-halved, bias included)
    w_ref,     # (4H, L)   bf16   [w_hh_scaled | w_fc1 | w_pol_heads | w_glu_heads], each padded to L lanes
    b_ref,     # (8+, L)   f32    rows: gate_scale, gate_offset, b_fc1, b_pol, b_glu, w_g1a rows, pad
    z_ref,     # SMEM (2,) f32    [z_action, z_cgm] ~ Normal(0,1)
    out_ref,   # (Bp, 7A)  f32    [mu|sigma|action|log_prob|cgm_mu|cgm_sigma|cgm]
):
    Bp = out_ref.shape[0]
    A = out_ref.shape[1] // 7
    H = w_ref.shape[0] // 4
    H4 = 4 * H
    T = xp_ref.shape[0] // Bp

    # ---------------- LSTM recurrence (input projection already hoisted) ----
    w_hh = w_ref[0:H, 0:H4]                              # bf16, i/f/o cols * 0.5
    gate_scale = jnp.broadcast_to(b_ref[0:1, 0:H4], (Bp, H4))   # hoisted bcast
    gate_offset = jnp.broadcast_to(b_ref[1:2, 0:H4], (Bp, H4))

    h = jnp.zeros((Bp, H), jnp.float32)
    c = jnp.zeros((Bp, H), jnp.float32)
    # T is small & static -> fully unroll; per-step row slices are 8-aligned.
    for t in range(T):
        gates = xp_ref[t * Bp:(t + 1) * Bp, :] + jnp.dot(
            h.astype(jnp.bfloat16), w_hh, preferred_element_type=jnp.float32)
        # sigmoid(x) = 0.5*(1 + tanh(x/2)); i/f/o pre-activations were halved
        # at init, so one full-vreg tanh covers all four gates.
        y = jnp.tanh(gates)
        acts = gate_scale * y + gate_offset
        i_g = acts[:, 0:H]
        f_g = acts[:, H:2 * H]
        g_g = acts[:, 2 * H:3 * H]
        o_g = acts[:, 3 * H:4 * H]
        c = f_g * c + i_g * g_g
        h = o_g * jnp.tanh(c)

    es = h.astype(jnp.bfloat16)                          # extract_states (Bp,H)

    # -------- PolicyModule fc1 + GlucoseModel fc1(state part): one matmul ---
    fc_both = jnp.dot(es, w_ref[H:2 * H, :],
                      preferred_element_type=jnp.float32) + b_ref[2:3, :]
    fc_p = jnp.maximum(fc_both[:, 0:H], 0.0)

    # -------- policy heads (mu | sigma packed) -------------------------------
    pol = jnp.dot(fc_p.astype(jnp.bfloat16), w_ref[2 * H:3 * H, :],
                  preferred_element_type=jnp.float32) + b_ref[3:4, :]
    mu = jnp.tanh(pol[:, 0:A])
    sigma = jax.nn.sigmoid(pol[:, A:2 * A] + 1e-5)

    action = jnp.clip(mu + sigma * z_ref[0], -1.0, 1.0)
    log_prob = (-0.5 * ((action - mu) / sigma) ** 2
                - jnp.log(sigma) - _LOG_SQRT_2PI)

    # -------- GlucoseModel (concat linear as split matmul) -------------------
    if A == 1:
        # (Bp,1)*(1,H) outer product on the VPU — avoids a K=1 MXU push.
        act_part = action * b_ref[5:6, 0:H]
    else:
        act_part = jnp.dot(action.astype(jnp.bfloat16),
                           b_ref[5:5 + A, 0:H].astype(jnp.bfloat16),
                           preferred_element_type=jnp.float32)
    fc_g = jnp.maximum(fc_both[:, H:2 * H] + act_part, 0.0)

    glu = jnp.dot(fc_g.astype(jnp.bfloat16), w_ref[3 * H:4 * H, :],
                  preferred_element_type=jnp.float32) + b_ref[4:5, :]
    cgm_mu = jnp.tanh(glu[:, 0:A])
    cgm_sigma = jax.nn.softplus(glu[:, A:2 * A] + 1e-5)
    cgm = jnp.clip(cgm_mu + cgm_sigma * z_ref[1], -1.0, 1.0)

    # -------- single fused output store --------------------------------------
    out_ref[...] = jnp.concatenate(
        [mu, sigma, action, log_prob, cgm_mu, cgm_sigma, cgm], axis=1)


def _actor_forward_impl(s_btf, p, z):
    """s_btf: (B, T, F) batch-first like PyTorch; returns 7 (B, A) arrays."""
    B, T, F = s_btf.shape
    A, H = p["w_g1a"].shape
    Bp = ((B + 7) // 8) * 8                  # pad batch to sublane multiple

    s_tm = jnp.transpose(s_btf.astype(jnp.float32), (1, 0, 2))   # (T, B, F)
    s_pad = jnp.zeros((T, Bp, F), jnp.float32).at[:, :B, :].set(s_tm)
    # Hoisted LSTM input projection (K=F is tiny; XLA does it, fused by jit).
    x_proj = s_pad.reshape(T * Bp, F) @ p["w_ih_s"] + p["b_lstm_s"]  # (T*Bp,4H)

    vmem = pl.BlockSpec(memory_space=pltpu.MemorySpace.VMEM)
    smem = pl.BlockSpec(memory_space=pltpu.MemorySpace.SMEM)

    out = pl.pallas_call(
        actor_kernel,
        out_shape=jax.ShapeDtypeStruct((Bp, 7 * A), jnp.float32),
        in_specs=[vmem, vmem, vmem, smem],
        out_specs=vmem,
    )(x_proj, p["w_slab"], p["b_slab"], z)

    out = out[:B]
    return tuple(out[:, i * A:(i + 1) * A] for i in range(7))


actor_forward = jax.jit(_actor_forward_impl)


# -------------------------- deterministic parameter init ---------------------
def _uniform(key, shape, bound):
    return jax.random.uniform(key, shape, jnp.float32, -bound, bound)


def _normed_linear(kw, kb, in_f, out_f, scale):
    bound = 1.0 / math.sqrt(in_f)
    w = _uniform(kw, (out_f, in_f), bound)
    w = w * scale / jnp.linalg.norm(w, axis=1, keepdims=True)
    b = _uniform(kb, (out_f,), bound)
    return w, b


def init_params(F, H, A, key):
    ks = jax.random.split(key, 16)
    bh = 1.0 / math.sqrt(H)
    w_ih_pt = _uniform(ks[0], (4 * H, F), bh)       # PyTorch layout (4H, F)
    w_hh_pt = _uniform(ks[1], (4 * H, H), bh)
    b_ih = _uniform(ks[2], (4 * H,), bh)
    b_hh = _uniform(ks[3], (4 * H,), bh)

    # PolicyModule: fc_layer1 Linear(H->H), mu/sigma NormedLinear(H->A, 0.1)
    w_p1_pt = _uniform(ks[4], (H, H), bh)
    b_p1 = _uniform(ks[5], (H,), bh)
    w_mu_pt, b_mu = _normed_linear(ks[6], ks[7], H, A, 0.1)
    w_sig_pt, b_sig = _normed_linear(ks[8], ks[9], H, A, 0.1)

    # GlucoseModel: fc_layer1 Linear(H+A->H), cgm heads NormedLinear(H->A, 0.1)
    bg = 1.0 / math.sqrt(H + A)
    w_g1_pt = _uniform(ks[10], (H, H + A), bg)
    b_g1 = _uniform(ks[11], (H,), bg)
    w_gmu_pt, b_gmu = _normed_linear(ks[12], ks[13], H, A, 0.1)
    w_gsig_pt, b_gsig = _normed_linear(ks[14], ks[15], H, A, 0.1)

    w_ih = w_ih_pt.T                                 # (F, 4H)  gates i,f,g,o
    w_hh = w_hh_pt.T                                 # (H, 4H)
    b_lstm = b_ih + b_hh                             # (4H,)

    # sigmoid(x) = 0.5*(1+tanh(x/2)): pre-scale i/f/o gate columns by 0.5 so
    # the kernel can run one full-vreg tanh per LSTM step.
    half = jnp.full((H,), 0.5, jnp.float32)
    col_scale = jnp.concatenate([half, half, jnp.ones((H,), jnp.float32), half])
    gate_scale = col_scale
    gate_offset = jnp.concatenate([half, half, jnp.zeros((H,), jnp.float32), half])

    w_ih_s = w_ih * col_scale[None, :]
    w_hh_s = w_hh * col_scale[None, :]
    b_lstm_s = (b_lstm * col_scale).reshape(1, 4 * H)

    L = max(4 * H, 128)                              # lane width of the slabs

    def pad_l(x):
        return jnp.pad(x, ((0, 0), (0, L - x.shape[-1])))

    w_fc1 = jnp.concatenate([w_p1_pt.T, w_g1_pt[:, :H].T], axis=1)   # (H, 2H)
    w_pol = jnp.concatenate([w_mu_pt.T, w_sig_pt.T], axis=1)         # (H, 2A)
    w_glu = jnp.concatenate([w_gmu_pt.T, w_gsig_pt.T], axis=1)       # (H, 2A)
    w_slab = jnp.concatenate(
        [pad_l(w_hh_s), pad_l(w_fc1), pad_l(w_pol), pad_l(w_glu)],
        axis=0).astype(jnp.bfloat16)                                 # (4H, L)

    w_g1a = w_g1_pt[:, H:].T                                         # (A, H)
    b_rows = [pad_l(gate_scale.reshape(1, -1)),
              pad_l(gate_offset.reshape(1, -1)),
              pad_l(jnp.concatenate([b_p1, b_g1]).reshape(1, -1)),
              pad_l(jnp.concatenate([b_mu, b_sig]).reshape(1, -1)),
              pad_l(jnp.concatenate([b_gmu, b_gsig]).reshape(1, -1)),
              pad_l(w_g1a)]
    b_slab = jnp.concatenate(b_rows, axis=0)                         # (5+A, L)
    pad_rows = (-b_slab.shape[0]) % 8
    if pad_rows:
        b_slab = jnp.pad(b_slab, ((0, pad_rows), (0, 0)))

    return dict(
        # kernel-side (packed / pre-scaled / pre-cast)
        w_ih_s=w_ih_s, b_lstm_s=b_lstm_s, w_slab=w_slab, b_slab=b_slab,
        # unpacked copies for the pure-JAX reference
        w_ih=w_ih, w_hh=w_hh, b_lstm=b_lstm.reshape(1, 4 * H),
        w_p1=w_p1_pt.T, b_p1=b_p1.reshape(1, H),
        w_mu=w_mu_pt.T, b_mu=b_mu.reshape(1, A),
        w_sig=w_sig_pt.T, b_sig=b_sig.reshape(1, A),
        w_g1s=w_g1_pt[:, :H].T, w_g1a=w_g1a, b_g1=b_g1.reshape(1, H),
        w_gmu=w_gmu_pt.T, b_gmu=b_gmu.reshape(1, A),
        w_gsig=w_gsig_pt.T, b_gsig=b_gsig.reshape(1, A),
    )


# -------------------------- pure-JAX reference (for correctness) -------------
def reference_forward(s_btf, p, z):
    B = s_btf.shape[0]
    H = p["w_hh"].shape[0]

    def cell(carry, x_t):
        h, c = carry
        gates = jnp.dot(x_t, p["w_ih"]) + _dot(h, p["w_hh"]) + p["b_lstm"]
        i_g = jax.nn.sigmoid(gates[:, 0:H])
        f_g = jax.nn.sigmoid(gates[:, H:2 * H])
        g_g = jnp.tanh(gates[:, 2 * H:3 * H])
        o_g = jax.nn.sigmoid(gates[:, 3 * H:4 * H])
        c = f_g * c + i_g * g_g
        h = o_g * jnp.tanh(c)
        return (h, c), None

    (h, _), _ = jax.lax.scan(
        cell,
        (jnp.zeros((B, H), jnp.float32), jnp.zeros((B, H), jnp.float32)),
        jnp.transpose(s_btf.astype(jnp.float32), (1, 0, 2)))
    es = h
    fc_p = jnp.maximum(_dot(es, p["w_p1"]) + p["b_p1"], 0.0)
    mu = jnp.tanh(_dot(fc_p, p["w_mu"]) + p["b_mu"])
    sigma = jax.nn.sigmoid(_dot(fc_p, p["w_sig"]) + p["b_sig"] + 1e-5)
    action = jnp.clip(mu + sigma * z[0], -1.0, 1.0)
    logp = -0.5 * ((action - mu) / sigma) ** 2 - jnp.log(sigma) - _LOG_SQRT_2PI
    fc_g = jnp.maximum(
        _dot(es, p["w_g1s"]) + _dot(action, p["w_g1a"]) + p["b_g1"], 0.0)
    cgm_mu = jnp.tanh(_dot(fc_g, p["w_gmu"]) + p["b_gmu"])
    cgm_sigma = jax.nn.softplus(_dot(fc_g, p["w_gsig"]) + p["b_gsig"] + 1e-5)
    cgm = jnp.clip(cgm_mu + cgm_sigma * z[1], -1.0, 1.0)
    return mu, sigma, action, logp, cgm_mu, cgm_sigma, cgm


if __name__ == "__main__":
    # n_features=3, feature_history=8 (seq len), n_rnn_hidden=32, 1 layer,
    # unidirectional, n_action=1, batch=4.
    B, T, F, H, A = 4, 8, 3, 32, 1

    key = jax.random.PRNGKey(0)
    k_s, k_p, k_z = jax.random.split(key, 3)
    s = jax.random.normal(k_s, (B, T, F), jnp.float32)
    params = init_params(F, H, A, k_p)
    z = jax.random.normal(k_z, (2,), jnp.float32)   # Normal(0,1) scalar samples

    outs = jax.block_until_ready(actor_forward(s, params, z))
    refs = reference_forward(s, params, z)

    names = ["mu", "sigma", "action", "log_prob", "cgm_mu", "cgm_sigma", "cgm"]
    for name, got, want in zip(names, outs, refs):
        assert got.shape == (B, A), (name, got.shape)
        assert jnp.allclose(got, want, atol=2e-3, rtol=2e-3), (
            name, float(jnp.max(jnp.abs(got - want))))

    print("KERNEL_OK")
</pallas_src>

<mosaic_0001>
module attributes {stable_mosaic.version = 11 : i64} {
  func.func @actor_kernel(%arg0: memref<64x128xf32, #tpu.memory_space<vmem>>, %arg1: memref<128x128xbf16, #tpu.memory_space<vmem>>, %arg2: memref<8x128xf32, #tpu.memory_space<vmem>>, %arg3: memref<2xf32, #tpu.memory_space<smem>>, %arg4: memref<8x7xf32, #tpu.memory_space<vmem>>) attributes {dimension_semantics = [], scalar_prefetch = 0 : i64, scratch_operands = 0 : i64, tpu.core_type = #tpu.core_type<tc>} {
    %c0 = arith.constant 0 : index
    %c0_0 = arith.constant 0 : index
    %0 = vector.load %arg1[%c0, %c0_0] : memref<128x128xbf16, #tpu.memory_space<vmem>>, vector<32x128xbf16>
    %c0_1 = arith.constant 0 : index
    %c0_2 = arith.constant 0 : index
    %1 = vector.load %arg2[%c0_1, %c0_2] : memref<8x128xf32, #tpu.memory_space<vmem>>, vector<1x128xf32>
    %2 = vector.shape_cast %1 : vector<1x128xf32> to vector<1x128xf32>
    %3 = vector.broadcast %2 : vector<1x128xf32> to vector<8x128xf32>
    %c1 = arith.constant 1 : index
    %c0_3 = arith.constant 0 : index
    %4 = vector.load %arg2[%c1, %c0_3] : memref<8x128xf32, #tpu.memory_space<vmem>>, vector<1x128xf32>
    %5 = vector.shape_cast %4 : vector<1x128xf32> to vector<1x128xf32>
    %6 = vector.broadcast %5 : vector<1x128xf32> to vector<8x128xf32>
    %cst = arith.constant 0.000000e+00 : f32
    %7 = vector.broadcast %cst : f32 to vector<8x32xf32>
    %cst_4 = arith.constant 0.000000e+00 : f32
    %8 = vector.broadcast %cst_4 : f32 to vector<8x32xf32>
    %c0_5 = arith.constant 0 : index
    %c0_6 = arith.constant 0 : index
    %9 = vector.load %arg0[%c0_5, %c0_6] : memref<64x128xf32, #tpu.memory_space<vmem>>, vector<8x128xf32>
    %10 = arith.truncf %7 : vector<8x32xf32> to vector<8x32xbf16>
    %cst_7 = arith.constant dense<0.000000e+00> : vector<8x128xf32>
    %11 = tpu.matmul %10, %0, %cst_7 {dimension_numbers = #tpu.dot_dimension_numbers<[1], [0], [0], [1], [0, 0, 1, 1], [], []>} : vector<8x32xbf16>, vector<32x128xbf16>, vector<8x128xf32> -> vector<8x128xf32>
    %12 = arith.addf %9, %11 : vector<8x128xf32>
    %13 = math.tanh %12 : vector<8x128xf32>
    %14 = arith.mulf %3, %13 : vector<8x128xf32>
    %15 = arith.addf %14, %6 : vector<8x128xf32>
    %16 = vector.extract_strided_slice %15 {offsets = [0, 0], sizes = [8, 32], strides = [1, 1]} : vector<8x128xf32> to vector<8x32xf32>
    %17 = vector.extract_strided_slice %15 {offsets = [0, 32], sizes = [8, 32], strides = [1, 1]} : vector<8x128xf32> to vector<8x32xf32>
    %18 = vector.extract_strided_slice %15 {offsets = [0, 64], sizes = [8, 32], strides = [1, 1]} : vector<8x128xf32> to vector<8x32xf32>
    %19 = vector.extract_strided_slice %15 {offsets = [0, 96], sizes = [8, 32], strides = [1, 1]} : vector<8x128xf32> to vector<8x32xf32>
    %20 = arith.mulf %17, %8 : vector<8x32xf32>
    %21 = arith.mulf %16, %18 : vector<8x32xf32>
    %22 = arith.addf %20, %21 : vector<8x32xf32>
    %23 = math.tanh %22 : vector<8x32xf32>
    %24 = arith.mulf %19, %23 : vector<8x32xf32>
    %c8 = arith.constant 8 : index
    %c0_8 = arith.constant 0 : index
    %25 = vector.load %arg0[%c8, %c0_8] : memref<64x128xf32, #tpu.memory_space<vmem>>, vector<8x128xf32>
    %26 = arith.truncf %24 : vector<8x32xf32> to vector<8x32xbf16>
    %cst_9 = arith.constant dense<0.000000e+00> : vector<8x128xf32>
    %27 = tpu.matmul %26, %0, %cst_9 {dimension_numbers = #tpu.dot_dimension_numbers<[1], [0], [0], [1], [0, 0, 1, 1], [], []>} : vector<8x32xbf16>, vector<32x128xbf16>, vector<8x128xf32> -> vector<8x128xf32>
    %28 = arith.addf %25, %27 : vector<8x128xf32>
    %29 = math.tanh %28 : vector<8x128xf32>
    %30 = arith.mulf %3, %29 : vector<8x128xf32>
    %31 = arith.addf %30, %6 : vector<8x128xf32>
    %32 = vector.extract_strided_slice %31 {offsets = [0, 0], sizes = [8, 32], strides = [1, 1]} : vector<8x128xf32> to vector<8x32xf32>
    %33 = vector.extract_strided_slice %31 {offsets = [0, 32], sizes = [8, 32], strides = [1, 1]} : vector<8x128xf32> to vector<8x32xf32>
    %34 = vector.extract_strided_slice %31 {offsets = [0, 64], sizes = [8, 32], strides = [1, 1]} : vector<8x128xf32> to vector<8x32xf32>
    %35 = vector.extract_strided_slice %31 {offsets = [0, 96], sizes = [8, 32], strides = [1, 1]} : vector<8x128xf32> to vector<8x32xf32>
    %36 = arith.mulf %33, %22 : vector<8x32xf32>
    %37 = arith.mulf %32, %34 : vector<8x32xf32>
    %38 = arith.addf %36, %37 : vector<8x32xf32>
    %39 = math.tanh %38 : vector<8x32xf32>
    %40 = arith.mulf %35, %39 : vector<8x32xf32>
    %c16 = arith.constant 16 : index
    %c0_10 = arith.constant 0 : index
    %41 = vector.load %arg0[%c16, %c0_10] : memref<64x128xf32, #tpu.memory_space<vmem>>, vector<8x128xf32>
    %42 = arith.truncf %40 : vector<8x32xf32> to vector<8x32xbf16>
    %cst_11 = arith.constant dense<0.000000e+00> : vector<8x128xf32>
    %43 = tpu.matmul %42, %0, %cst_11 {dimension_numbers = #tpu.dot_dimension_numbers<[1], [0], [0], [1], [0, 0, 1, 1], [], []>} : vector<8x32xbf16>, vector<32x128xbf16>, vector<8x128xf32> -> vector<8x128xf32>
    %44 = arith.addf %41, %43 : vector<8x128xf32>
    %45 = math.tanh %44 : vector<8x128xf32>
    %46 = arith.mulf %3, %45 : vector<8x128xf32>
    %47 = arith.addf %46, %6 : vector<8x128xf32>
    %48 = vector.extract_strided_slice %47 {offsets = [0, 0], sizes = [8, 32], strides = [1, 1]} : vector<8x128xf32> to vector<8x32xf32>
    %49 = vector.extract_strided_slice %47 {offsets = [0, 32], sizes = [8, 32], strides = [1, 1]} : vector<8x128xf32> to vector<8x32xf32>
    %50 = vector.extract_strided_slice %47 {offsets = [0, 64], sizes = [8, 32], strides = [1, 1]} : vector<8x128xf32> to vector<8x32xf32>
    %51 = vector.extract_strided_slice %47 {offsets = [0, 96], sizes = [8, 32], strides = [1, 1]} : vector<8x128xf32> to vector<8x32xf32>
    %52 = arith.mulf %49, %38 : vector<8x32xf32>
    %53 = arith.mulf %48, %50 : vector<8x32xf32>
    %54 = arith.addf %52, %53 : vector<8x32xf32>
    %55 = math.tanh %54 : vector<8x32xf32>
    %56 = arith.mulf %51, %55 : vector<8x32xf32>
    %c24 = arith.constant 24 : index
    %c0_12 = arith.constant 0 : index
    %57 = vector.load %arg0[%c24, %c0_12] : memref<64x128xf32, #tpu.memory_space<vmem>>, vector<8x128xf32>
    %58 = arith.truncf %56 : vector<8x32xf32> to vector<8x32xbf16>
    %cst_13 = arith.constant dense<0.000000e+00> : vector<8x128xf32>
    %59 = tpu.matmul %58, %0, %cst_13 {dimension_numbers = #tpu.dot_dimension_numbers<[1], [0], [0], [1], [0, 0, 1, 1], [], []>} : vector<8x32xbf16>, vector<32x128xbf16>, vector<8x128xf32> -> vector<8x128xf32>
    %60 = arith.addf %57, %59 : vector<8x128xf32>
    %61 = math.tanh %60 : vector<8x128xf32>
    %62 = arith.mulf %3, %61 : vector<8x128xf32>
    %63 = arith.addf %62, %6 : vector<8x128xf32>
    %64 = vector.extract_strided_slice %63 {offsets = [0, 0], sizes = [8, 32], strides = [1, 1]} : vector<8x128xf32> to vector<8x32xf32>
    %65 = vector.extract_strided_slice %63 {offsets = [0, 32], sizes = [8, 32], strides = [1, 1]} : vector<8x128xf32> to vector<8x32xf32>
    %66 = vector.extract_strided_slice %63 {offsets = [0, 64], sizes = [8, 32], strides = [1, 1]} : vector<8x128xf32> to vector<8x32xf32>
    %67 = vector.extract_strided_slice %63 {offsets = [0, 96], sizes = [8, 32], strides = [1, 1]} : vector<8x128xf32> to vector<8x32xf32>
    %68 = arith.mulf %65, %54 : vector<8x32xf32>
    %69 = arith.mulf %64, %66 : vector<8x32xf32>
    %70 = arith.addf %68, %69 : vector<8x32xf32>
    %71 = math.tanh %70 : vector<8x32xf32>
    %72 = arith.mulf %67, %71 : vector<8x32xf32>
    %c32 = arith.constant 32 : index
    %c0_14 = arith.constant 0 : index
    %73 = vector.load %arg0[%c32, %c0_14] : memref<64x128xf32, #tpu.memory_space<vmem>>, vector<8x128xf32>
    %74 = arith.truncf %72 : vector<8x32xf32> to vector<8x32xbf16>
    %cst_15 = arith.constant dense<0.000000e+00> : vector<8x128xf32>
    %75 = tpu.matmul %74, %0, %cst_15 {dimension_numbers = #tpu.dot_dimension_numbers<[1], [0], [0], [1], [0, 0, 1, 1], [], []>} : vector<8x32xbf16>, vector<32x128xbf16>, vector<8x128xf32> -> vector<8x128xf32>
    %76 = arith.addf %73, %75 : vector<8x128xf32>
    %77 = math.tanh %76 : vector<8x128xf32>
    %78 = arith.mulf %3, %77 : vector<8x128xf32>
    %79 = arith.addf %78, %6 : vector<8x128xf32>
    %80 = vector.extract_strided_slice %79 {offsets = [0, 0], sizes = [8, 32], strides = [1, 1]} : vector<8x128xf32> to vector<8x32xf32>
    %81 = vector.extract_strided_slice %79 {offsets = [0, 32], sizes = [8, 32], strides = [1, 1]} : vector<8x128xf32> to vector<8x32xf32>
    %82 = vector.extract_strided_slice %79 {offsets = [0, 64], sizes = [8, 32], strides = [1, 1]} : vector<8x128xf32> to vector<8x32xf32>
    %83 = vector.extract_strided_slice %79 {offsets = [0, 96], sizes = [8, 32], strides = [1, 1]} : vector<8x128xf32> to vector<8x32xf32>
    %84 = arith.mulf %81, %70 : vector<8x32xf32>
    %85 = arith.mulf %80, %82 : vector<8x32xf32>
    %86 = arith.addf %84, %85 : vector<8x32xf32>
    %87 = math.tanh %86 : vector<8x32xf32>
    %88 = arith.mulf %83, %87 : vector<8x32xf32>
    %c40 = arith.constant 40 : index
    %c0_16 = arith.constant 0 : index
    %89 = vector.load %arg0[%c40, %c0_16] : memref<64x128xf32, #tpu.memory_space<vmem>>, vector<8x128xf32>
    %90 = arith.truncf %88 : vector<8x32xf32> to vector<8x32xbf16>
    %cst_17 = arith.constant dense<0.000000e+00> : vector<8x128xf32>
    %91 = tpu.matmul %90, %0, %cst_17 {dimension_numbers = #tpu.dot_dimension_numbers<[1], [0], [0], [1], [0, 0, 1, 1], [], []>} : vector<8x32xbf16>, vector<32x128xbf16>, vector<8x128xf32> -> vector<8x128xf32>
    %92 = arith.addf %89, %91 : vector<8x128xf32>
    %93 = math.tanh %92 : vector<8x128xf32>
    %94 = arith.mulf %3, %93 : vector<8x128xf32>
    %95 = arith.addf %94, %6 : vector<8x128xf32>
    %96 = vector.extract_strided_slice %95 {offsets = [0, 0], sizes = [8, 32], strides = [1, 1]} : vector<8x128xf32> to vector<8x32xf32>
    %97 = vector.extract_strided_slice %95 {offsets = [0, 32], sizes = [8, 32], strides = [1, 1]} : vector<8x128xf32> to vector<8x32xf32>
    %98 = vector.extract_strided_slice %95 {offsets = [0, 64], sizes = [8, 32], strides = [1, 1]} : vector<8x128xf32> to vector<8x32xf32>
    %99 = vector.extract_strided_slice %95 {offsets = [0, 96], sizes = [8, 32], strides = [1, 1]} : vector<8x128xf32> to vector<8x32xf32>
    %100 = arith.mulf %97, %86 : vector<8x32xf32>
    %101 = arith.mulf %96, %98 : vector<8x32xf32>
    %102 = arith.addf %100, %101 : vector<8x32xf32>
    %103 = math.tanh %102 : vector<8x32xf32>
    %104 = arith.mulf %99, %103 : vector<8x32xf32>
    %c48 = arith.constant 48 : index
    %c0_18 = arith.constant 0 : index
    %105 = vector.load %arg0[%c48, %c0_18] : memref<64x128xf32, #tpu.memory_space<vmem>>, vector<8x128xf32>
    %106 = arith.truncf %104 : vector<8x32xf32> to vector<8x32xbf16>
    %cst_19 = arith.constant dense<0.000000e+00> : vector<8x128xf32>
    %107 = tpu.matmul %106, %0, %cst_19 {dimension_numbers = #tpu.dot_dimension_numbers<[1], [0], [0], [1], [0, 0, 1, 1], [], []>} : vector<8x32xbf16>, vector<32x128xbf16>, vector<8x128xf32> -> vector<8x128xf32>
    %108 = arith.addf %105, %107 : vector<8x128xf32>
    %109 = math.tanh %108 : vector<8x128xf32>
    %110 = arith.mulf %3, %109 : vector<8x128xf32>
    %111 = arith.addf %110, %6 : vector<8x128xf32>
    %112 = vector.extract_strided_slice %111 {offsets = [0, 0], sizes = [8, 32], strides = [1, 1]} : vector<8x128xf32> to vector<8x32xf32>
    %113 = vector.extract_strided_slice %111 {offsets = [0, 32], sizes = [8, 32], strides = [1, 1]} : vector<8x128xf32> to vector<8x32xf32>
    %114 = vector.extract_strided_slice %111 {offsets = [0, 64], sizes = [8, 32], strides = [1, 1]} : vector<8x128xf32> to vector<8x32xf32>
    %115 = vector.extract_strided_slice %111 {offsets = [0, 96], sizes = [8, 32], strides = [1, 1]} : vector<8x128xf32> to vector<8x32xf32>
    %116 = arith.mulf %113, %102 : vector<8x32xf32>
    %117 = arith.mulf %112, %114 : vector<8x32xf32>
    %118 = arith.addf %116, %117 : vector<8x32xf32>
    %119 = math.tanh %118 : vector<8x32xf32>
    %120 = arith.mulf %115, %119 : vector<8x32xf32>
    %c56 = arith.constant 56 : index
    %c0_20 = arith.constant 0 : index
    %121 = vector.load %arg0[%c56, %c0_20] : memref<64x128xf32, #tpu.memory_space<vmem>>, vector<8x128xf32>
    %122 = arith.truncf %120 : vector<8x32xf32> to vector<8x32xbf16>
    %cst_21 = arith.constant dense<0.000000e+00> : vector<8x128xf32>
    %123 = tpu.matmul %122, %0, %cst_21 {dimension_numbers = #tpu.dot_dimension_numbers<[1], [0], [0], [1], [0, 0, 1, 1], [], []>} : vector<8x32xbf16>, vector<32x128xbf16>, vector<8x128xf32> -> vector<8x128xf32>
    %124 = arith.addf %121, %123 : vector<8x128xf32>
    %125 = math.tanh %124 : vector<8x128xf32>
    %126 = arith.mulf %3, %125 : vector<8x128xf32>
    %127 = arith.addf %126, %6 : vector<8x128xf32>
    %128 = vector.extract_strided_slice %127 {offsets = [0, 0], sizes = [8, 32], strides = [1, 1]} : vector<8x128xf32> to vector<8x32xf32>
    %129 = vector.extract_strided_slice %127 {offsets = [0, 32], sizes = [8, 32], strides = [1, 1]} : vector<8x128xf32> to vector<8x32xf32>
    %130 = vector.extract_strided_slice %127 {offsets = [0, 64], sizes = [8, 32], strides = [1, 1]} : vector<8x128xf32> to vector<8x32xf32>
    %131 = vector.extract_strided_slice %127 {offsets = [0, 96], sizes = [8, 32], strides = [1, 1]} : vector<8x128xf32> to vector<8x32xf32>
    %132 = arith.mulf %129, %118 : vector<8x32xf32>
    %133 = arith.mulf %128, %130 : vector<8x32xf32>
    %134 = arith.addf %132, %133 : vector<8x32xf32>
    %135 = math.tanh %134 : vector<8x32xf32>
    %136 = arith.mulf %131, %135 : vector<8x32xf32>
    %137 = arith.truncf %136 : vector<8x32xf32> to vector<8x32xbf16>
    %c32_22 = arith.constant 32 : index
    %c0_23 = arith.constant 0 : index
    %138 = vector.load %arg1[%c32_22, %c0_23] : memref<128x128xbf16, #tpu.memory_space<vmem>>, vector<32x128xbf16>
    %cst_24 = arith.constant dense<0.000000e+00> : vector<8x128xf32>
    %139 = tpu.matmul %137, %138, %cst_24 {dimension_numbers = #tpu.dot_dimension_numbers<[1], [0], [0], [1], [0, 0, 1, 1], [], []>} : vector<8x32xbf16>, vector<32x128xbf16>, vector<8x128xf32> -> vector<8x128xf32>
    %c2 = arith.constant 2 : index
    %c0_25 = arith.constant 0 : index
    %140 = vector.load %arg2[%c2, %c0_25] : memref<8x128xf32, #tpu.memory_space<vmem>>, vector<1x128xf32>
    %141 = vector.broadcast %140 : vector<1x128xf32> to vector<8x128xf32>
    %142 = arith.addf %139, %141 : vector<8x128xf32>
    %143 = vector.extract_strided_slice %142 {offsets = [0, 0], sizes = [8, 32], strides = [1, 1]} : vector<8x128xf32> to vector<8x32xf32>
    %cst_26 = arith.constant 0.000000e+00 : f32
    %144 = vector.broadcast %cst_26 : f32 to vector<8x32xf32>
    %145 = arith.maximumf %143, %144 : vector<8x32xf32>
    %146 = arith.truncf %145 : vector<8x32xf32> to vector<8x32xbf16>
    %c64 = arith.constant 64 : index
    %c0_27 = arith.constant 0 : index
    %147 = vector.load %arg1[%c64, %c0_27] : memref<128x128xbf16, #tpu.memory_space<vmem>>, vector<32x128xbf16>
    %cst_28 = arith.constant dense<0.000000e+00> : vector<8x128xf32>
    %148 = tpu.matmul %146, %147, %cst_28 {dimension_numbers = #tpu.dot_dimension_numbers<[1], [0], [0], [1], [0, 0, 1, 1], [], []>} : vector<8x32xbf16>, vector<32x128xbf16>, vector<8x128xf32> -> vector<8x128xf32>
    %c3 = arith.constant 3 : index
    %c0_29 = arith.constant 0 : index
    %149 = vector.load %arg2[%c3, %c0_29] : memref<8x128xf32, #tpu.memory_space<vmem>>, vector<1x128xf32>
    %150 = vector.broadcast %149 : vector<1x128xf32> to vector<8x128xf32>
    %151 = arith.addf %148, %150 : vector<8x128xf32>
    %152 = vector.extract_strided_slice %151 {offsets = [0, 0], sizes = [8, 1], strides = [1, 1]} : vector<8x128xf32> to vector<8x1xf32>
    %153 = math.tanh %152 : vector<8x1xf32>
    %154 = vector.extract_strided_slice %151 {offsets = [0, 1], sizes = [8, 1], strides = [1, 1]} : vector<8x128xf32> to vector<8x1xf32>
    %cst_30 = arith.constant 9.99999974E-6 : f32
    %155 = vector.broadcast %cst_30 : f32 to vector<8x1xf32>
    %156 = arith.addf %154, %155 : vector<8x1xf32>
    %157 = arith.negf %156 : vector<8x1xf32>
    %158 = math.exp %157 : vector<8x1xf32>
    %cst_31 = arith.constant 1.000000e+00 : f32
    %159 = vector.broadcast %cst_31 : f32 to vector<8x1xf32>
    %160 = arith.addf %159, %158 : vector<8x1xf32>
    %161 = arith.divf %159, %160 : vector<8x1xf32>
    %c0_32 = arith.constant 0 : index
    %162 = memref.load %arg3[%c0_32] : memref<2xf32, #tpu.memory_space<smem>>
    %163 = vector.broadcast %162 : f32 to vector<8x1xf32>
    %164 = arith.mulf %161, %163 : vector<8x1xf32>
    %165 = arith.addf %153, %164 : vector<8x1xf32>
    %cst_33 = arith.constant -1.000000e+00 : f32
    %cst_34 = arith.constant 1.000000e+00 : f32
    %166 = vector.broadcast %cst_33 : f32 to vector<8x1xf32>
    %167 = arith.maximumf %166, %165 : vector<8x1xf32>
    %168 = vector.broadcast %cst_34 : f32 to vector<8x1xf32>
    %169 = arith.minimumf %168, %167 : vector<8x1xf32>
    %170 = arith.subf %169, %153 : vector<8x1xf32>
    %171 = arith.divf %170, %161 : vector<8x1xf32>
    %172 = arith.mulf %171, %171 : vector<8x1xf32>
    %cst_35 = arith.constant -5.000000e-01 : f32
    %173 = vector.broadcast %cst_35 : f32 to vector<8x1xf32>
    %174 = arith.mulf %173, %172 : vector<8x1xf32>
    %175 = math.log %161 : vector<8x1xf32>
    %176 = arith.subf %174, %175 : vector<8x1xf32>
    %cst_36 = arith.constant 0.918938517 : f32
    %177 = vector.broadcast %cst_36 : f32 to vector<8x1xf32>
    %178 = arith.subf %176, %177 : vector<8x1xf32>
    %c5 = arith.constant 5 : index
    %c0_37 = arith.constant 0 : index
    %179 = vector.load %arg2[%c5, %c0_37] : memref<8x128xf32, #tpu.memory_space<vmem>>, vector<1x32xf32>
    %180 = vector.broadcast %169 : vector<8x1xf32> to vector<8x32xf32>
    %181 = vector.broadcast %179 : vector<1x32xf32> to vector<8x32xf32>
    %182 = arith.mulf %180, %181 : vector<8x32xf32>
    %183 = vector.extract_strided_slice %142 {offsets = [0, 32], sizes = [8, 32], strides = [1, 1]} : vector<8x128xf32> to vector<8x32xf32>
    %184 = arith.addf %183, %182 : vector<8x32xf32>
    %cst_38 = arith.constant 0.000000e+00 : f32
    %185 = vector.broadcast %cst_38 : f32 to vector<8x32xf32>
    %186 = arith.maximumf %184, %185 : vector<8x32xf32>
    %187 = arith.truncf %186 : vector<8x32xf32> to vector<8x32xbf16>
    %c96 = arith.constant 96 : index
    %c0_39 = arith.constant 0 : index
    %188 = vector.load %arg1[%c96, %c0_39] : memref<128x128xbf16, #tpu.memory_space<vmem>>, vector<32x128xbf16>
    %cst_40 = arith.constant dense<0.000000e+00> : vector<8x128xf32>
    %189 = tpu.matmul %187, %188, %cst_40 {dimension_numbers = #tpu.dot_dimension_numbers<[1], [0], [0], [1], [0, 0, 1, 1], [], []>} : vector<8x32xbf16>, vector<32x128xbf16>, vector<8x128xf32> -> vector<8x128xf32>
    %c4 = arith.constant 4 : index
    %c0_41 = arith.constant 0 : index
    %190 = vector.load %arg2[%c4, %c0_41] : memref<8x128xf32, #tpu.memory_space<vmem>>, vector<1x128xf32>
    %191 = vector.broadcast %190 : vector<1x128xf32> to vector<8x128xf32>
    %192 = arith.addf %189, %191 : vector<8x128xf32>
    %193 = vector.extract_strided_slice %192 {offsets = [0, 0], sizes = [8, 1], strides = [1, 1]} : vector<8x128xf32> to vector<8x1xf32>
    %194 = math.tanh %193 : vector<8x1xf32>
    %195 = vector.extract_strided_slice %192 {offsets = [0, 1], sizes = [8, 1], strides = [1, 1]} : vector<8x128xf32> to vector<8x1xf32>
    %cst_42 = arith.constant 9.99999974E-6 : f32
    %196 = vector.broadcast %cst_42 : f32 to vector<8x1xf32>
    %197 = arith.addf %195, %196 : vector<8x1xf32>
    %cst_43 = arith.constant 0.000000e+00 : f32
    %198 = vector.broadcast %cst_43 : f32 to vector<8x1xf32>
    %199 = arith.maximumf %197, %198 : vector<8x1xf32>
    %200 = vector.broadcast %cst_43 : f32 to vector<8x1xf32>
    %201 = arith.subf %197, %200 : vector<8x1xf32>
    %202 = arith.cmpf one, %201, %201 : vector<8x1xf32>
    %203 = vector.broadcast %cst_43 : f32 to vector<8x1xf32>
    %204 = arith.addf %197, %203 : vector<8x1xf32>
    %205 = math.absf %201 : vector<8x1xf32>
    %cst_44 = arith.constant 0.000000e+00 : f32
    %206 = vector.broadcast %cst_44 : f32 to vector<8x1xf32>
    %207 = arith.subf %206, %205 : vector<8x1xf32>
    %208 = math.exp %207 : vector<8x1xf32>
    %209 = math.log1p %208 : vector<8x1xf32>
    %210 = arith.addf %199, %209 : vector<8x1xf32>
    %211 = arith.select %202, %204, %210 : vector<8x1xi1>, vector<8x1xf32>
    %c1_45 = arith.constant 1 : index
    %212 = memref.load %arg3[%c1_45] : memref<2xf32, #tpu.memory_space<smem>>
    %213 = vector.broadcast %212 : f32 to vector<8x1xf32>
    %214 = arith.mulf %211, %213 : vector<8x1xf32>
    %215 = arith.addf %194, %214 : vector<8x1xf32>
    %cst_46 = arith.constant -1.000000e+00 : f32
    %cst_47 = arith.constant 1.000000e+00 : f32
    %216 = vector.broadcast %cst_46 : f32 to vector<8x1xf32>
    %217 = arith.maximumf %216, %215 : vector<8x1xf32>
    %218 = vector.broadcast %cst_47 : f32 to vector<8x1xf32>
    %219 = arith.minimumf %218, %217 : vector<8x1xf32>
    %220 = tpu.concatenate %153, %161, %169, %178, %194, %211, %219 in 1 : vector<8x1xf32>, vector<8x1xf32>, vector<8x1xf32>, vector<8x1xf32>, vector<8x1xf32>, vector<8x1xf32>, vector<8x1xf32> -> vector<8x7xf32>
    %c0_48 = arith.constant 0 : index
    %c0_49 = arith.constant 0 : index
    %221 = vector.load %arg4[%c0_48, %c0_49] : memref<8x7xf32, #tpu.memory_space<vmem>>, vector<8x7xf32>
    tpu.vector_store %arg4[%c0_48, %c0_49], %220 {strides = array<i32>} : memref<8x7xf32, #tpu.memory_space<vmem>>, vector<8x7xf32>,
    return
  }
}

</mosaic_0001>

<llo_original>
// kernel: _actor_forward_impl.1
$region0: #{_actor_forward_impl.1}
  #allocation0 [shape = 'u32[]', space=smem, size = 0x4, offset = 0x4, fixed_abs, tag = 'smem constant byte address 0x4 - core index']
  #allocation1 [shape = 'u32[144,128]{1,0:T(1,128)}', space=vmem, size = 0x12000, scoped, tag = 'internal scratch']
  %s0 = inlined_call_operand.vmem [shape: f32[64,128], index: 0, kind: input, shape index: {}]
  %s1 = inlined_call_operand.vmem [shape: bf16[128,128], index: 1, kind: input, shape index: {}]
  %s2 = inlined_call_operand.vmem [shape: f32[8,128], index: 2, kind: input, shape index: {}]
  %s3 = inlined_call_operand.vmem [shape: f32[2], index: 3, kind: input, shape index: {}]
  %s4 = inlined_call_operand.vmem [shape: f32[8,7], index: 4, kind: output, shape index: {}]
  %s5 = sld [smem:[#allocation0]]
  $region30: #{_actor_forward_impl.1} parent=0
    _
  %s7 = ssub.s32 1, %s5
  %s8 = scalar_select 0, %s7, %s5
  $region1: #{_actor_forward_impl.1} parent=0
    #allocation2 [shape = 'u8[512]{0}', space=smem, size = 0x200, scoped, tag = 'input window, operand 3, single buffered']
    #allocation3 [shape = 's32[1]{0}', space=sflag, size = 0x4, scoped, tag = 'scoped memory for _actor_forward_impl.1']
    %9 = vsyncpa [#allocation3], 0
    // Predicated region
    $region2: #{_actor_forward_impl.1} parent=1 // pred_check
      _
    $region3: #{_actor_forward_impl.1} parent=1 // pred_check_branch
      %11 = sbr.rel (0) target = $region5
    $region4: #{_actor_forward_impl.1} parent=1 // pred_region
      _
    $region5: #{_actor_forward_impl.1} parent=1 // pred_fallthru
      _
    // Predicated region
    $region6: #{_actor_forward_impl.1} parent=1 // pred_check
      _
    $region7: #{_actor_forward_impl.1} parent=1 // pred_check_branch
      %13 = sbr.rel (0) target = $region9
    $region8: #{_actor_forward_impl.1} parent=1 // pred_region
      _
    $region9: #{_actor_forward_impl.1} parent=1 // pred_fallthru
      _
    // Predicated region
    $region10: #{_actor_forward_impl.1} parent=1 // pred_check
      _
    $region11: #{_actor_forward_impl.1} parent=1 // pred_check_branch
      %15 = sbr.rel (0) target = $region13
    $region12: #{_actor_forward_impl.1} parent=1 // pred_region
      _
    $region13: #{_actor_forward_impl.1} parent=1 // pred_fallthru
      _
    // Predicated region
    $region14: #{_actor_forward_impl.1} parent=1 // pred_check
      _
    $region15: #{_actor_forward_impl.1} parent=1 // pred_check_branch
      %17 = sbr.rel (0) target = $region17
    $region16: #{_actor_forward_impl.1} parent=1 // pred_region
      %s19 = ssub.s32 16, 16
      %20 = vsyncadd [#allocation3], %s19
      %s22 = sshll.u32 %s3, 4
      %s23 = int_to_ptr.vmem [resolvable:$true] %s22
      %25 = dma.vmem_to_smem %s23, 16, [#allocation2], [#allocation3]
    $region17: #{_actor_forward_impl.1} parent=1 // pred_fallthru
      _
    // Predicated region
    $region18: #{_actor_forward_impl.1} parent=1 // pred_check
      _
    $region19: #{_actor_forward_impl.1} parent=1 // pred_check_branch
      %27 = sbr.rel (0) target = $region21
    $region20: #{_actor_forward_impl.1} parent=1 // pred_region
      %28 = dma.done [#allocation3], 16
    $region21: #{_actor_forward_impl.1} parent=1 // pred_fallthru
      _
    %29 = sfence
    %v31 = vld [vmem:[%s1] sm:$0xf]
    %v32 = vld [vmem:[%s1 + $0x4] sm:$0xf]
    %v33 = vld [vmem:[%s1 + $0x8] sm:$0xf]
    %v34 = vld [vmem:[%s1 + $0xc] sm:$0xf]
    %v35 = vld [vmem:[%s2] sm:$0x1]
    %v36 = vlaneseq
    %v37 = vshrl.u32 %v36, 7
    %v38 = vsub.s32 0, %v37
    %v39 = vrot.slane %v35, %v38
    %v40 = vld [vmem:[%s2 + $0x1] sm:$0x1]
    %v41 = vlaneseq
    %v42 = vshrl.u32 %v41, 7
    %v43 = vsub.s32 0, %v42
    %v44 = vrot.slane %v40, %v43
    %v45 = vld [vmem:[%s0] sm:$0xff]
    %v50 = vunpack.c.l.b16 %v31
    %v51 = vunpack.c.l.b16 %v32
    %v52 = vunpack.c.l.b16 %v33
    %v53 = vunpack.c.l.b16 %v34
    %v54 = vpack.c.b16 %v51, %v50
    %v55 = vpack.c.b16 %v53, %v52
    %vm58 = vcmask 261120
    %v60 = vsel %vm58, 0, 0
    %62 = vmatprep.subr.bf16.mxu0 0
    %63 = vmatpush1.bf16.msra.mxu0 %v54
    %64 = vmatprep.subr.bf16.mxu0 0
    %65 = vmatpush1.bf16.msra.mxu0 %v55
    %66 = vmatprep.subr.bf16.mxu0 0
    %67 = vmatpush1.bf16.msra.mxu0 0
    %68 = vmatprep.subr.bf16.mxu0 0
    %69 = vmatpush1.bf16.msra.mxu0 0
    %70 = vmatprep.subr.bf16.mxu0 0
    %71 = vmatpush1.bf16.msra.mxu0 0
    %72 = vmatprep.subr.bf16.mxu0 0
    %73 = vmatpush1.bf16.msra.mxu0 0
    %74 = vmatprep.subr.bf16.mxu0 0
    %75 = vmatpush1.bf16.msra.mxu0 0
    %76 = vmatprep.subr.bf16.mxu0 0
    %77 = vmatpush1.bf16.msra.mxu0 0
    %78 = vmatprep.subr.bf16.mxu0 0
    %79 = vmatpush1.bf16.msra.mxu0 0
    %80 = vmatprep.subr.bf16.mxu0 0
    %81 = vmatpush1.bf16.msra.mxu0 0
    %82 = vmatprep.subr.bf16.mxu0 0
    %83 = vmatpush1.bf16.msra.mxu0 0
    %84 = vmatprep.subr.bf16.mxu0 0
    %85 = vmatpush1.bf16.msra.mxu0 0
    %86 = vmatprep.subr.bf16.mxu0 0
    %87 = vmatpush1.bf16.msra.mxu0 0
    %88 = vmatprep.subr.bf16.mxu0 0
    %89 = vmatpush1.bf16.msra.mxu0 0
    %90 = vmatprep.subr.bf16.mxu0 0
    %91 = vmatpush1.bf16.msra.mxu0 0
    %92 = vmatprep.subr.bf16.mxu0 0
    %93 = vmatpush1.bf16.msra.mxu0 0
    %94 = vmatprep.mubr.bf16.mxu0 0
    %95 = vmatmul.mubr.bf16.gmra.mrb[0].mxu0 %v60
    %v96 = vpop.f32.mrb[0].mxu0
    %v97 = vadd.f32 0.0, %v96
    %v98 = vpop.f32.mrb[0].mxu0
    %v99 = vpop.f32.mrb[0].mxu0
    %v100 = vpop.f32.mrb[0].mxu0
    %101 = vdwg.mxu0
    %v102 = vadd.f32 %v45, %v97
    %v103 = vtanh.pop %v102
    %v104 = vmul.f32 %v39, %v103
    %v105 = vadd.f32 %v104, %v44
    %v106 = vmul.f32 %v105, 0.0
    %108 = vrot.lane.b32.xlu0 %v105, 64
    %v109 = vpop.permute.xlu0 %108
    %v111 = vmul.f32 %v105, %v109
    %113 = vrot.lane.b32.xlu0 %v111, 32
    %v114 = vpop.permute.xlu0 %113
    %v116 = vadd.f32 %v106, %v114
    %v117 = vtanh.pop %v116
    %119 = vrot.lane.b32.xlu0 %v117, 64
    %v120 = vpop.permute.xlu0 %119
    %v122 = vmul.f32 %v105, %v120
    %v123 = vld [vmem:[%s0 + $0x8] sm:$0xff]
    %v124 = vpack.c.bf16 %v122, %v122
    %126 = vrot.lane.b32.xlu0 %v124, 32
    %v127 = vpop.permute.xlu0 %126
    %v129 = vsel %vm58, %v127, 0
    %131 = vmatprep.subr.bf16.mxu0 0
    %132 = vmatpush1.bf16.msra.mxu0 %v54
    %133 = vmatprep.subr.bf16.mxu0 0
    %134 = vmatpush1.bf16.msra.mxu0 %v55
    %135 = vmatprep.subr.bf16.mxu0 0
    %136 = vmatpush1.bf16.msra.mxu0 0
    %137 = vmatprep.subr.bf16.mxu0 0
    %138 = vmatpush1.bf16.msra.mxu0 0
    %139 = vmatprep.subr.bf16.mxu0 0
    %140 = vmatpush1.bf16.msra.mxu0 0
    %141 = vmatprep.subr.bf16.mxu0 0
    %142 = vmatpush1.bf16.msra.mxu0 0
    %143 = vmatprep.subr.bf16.mxu0 0
    %144 = vmatpush1.bf16.msra.mxu0 0
    %145 = vmatprep.subr.bf16.mxu0 0
    %146 = vmatpush1.bf16.msra.mxu0 0
    %147 = vmatprep.subr.bf16.mxu0 0
    %148 = vmatpush1.bf16.msra.mxu0 0
    %149 = vmatprep.subr.bf16.mxu0 0
    %150 = vmatpush1.bf16.msra.mxu0 0
    %151 = vmatprep.subr.bf16.mxu0 0
    %152 = vmatpush1.bf16.msra.mxu0 0
    %153 = vmatprep.subr.bf16.mxu0 0
    %154 = vmatpush1.bf16.msra.mxu0 0
    %155 = vmatprep.subr.bf16.mxu0 0
    %156 = vmatpush1.bf16.msra.mxu0 0
    %157 = vmatprep.subr.bf16.mxu0 0
    %158 = vmatpush1.bf16.msra.mxu0 0
    %159 = vmatprep.subr.bf16.mxu0 0
    %160 = vmatpush1.bf16.msra.mxu0 0
    %161 = vmatprep.subr.bf16.mxu0 0
    %162 = vmatpush1.bf16.msra.mxu0 0
    %163 = vmatprep.mubr.bf16.mxu0 0
    %164 = vmatmul.mubr.bf16.gmra.mrb[0].mxu0 %v129
    %v165 = vpop.f32.mrb[0].mxu0
    %v166 = vadd.f32 0.0, %v165
    %v167 = vpop.f32.mrb[0].mxu0
    %v168 = vpop.f32.mrb[0].mxu0
    %v169 = vpop.f32.mrb[0].mxu0
    %170 = vdwg.mxu0
    %v171 = vadd.f32 %v123, %v166
    %v172 = vtanh.pop %v171
    %v173 = vmul.f32 %v39, %v172
    %v174 = vadd.f32 %v173, %v44
    %v175 = vmul.f32 %v174, %v116
    %177 = vrot.lane.b32.xlu0 %v174, 64
    %v178 = vpop.permute.xlu0 %177
    %v180 = vmul.f32 %v174, %v178
    %182 = vrot.lane.b32.xlu0 %v180, 32
    %v183 = vpop.permute.xlu0 %182
    %v185 = vadd.f32 %v175, %v183
    %v186 = vtanh.pop %v185
    %188 = vrot.lane.b32.xlu0 %v186, 64
    %v189 = vpop.permute.xlu0 %188
    %v191 = vmul.f32 %v174, %v189
    %v192 = vld [vmem:[%s0 + $0x10] sm:$0xff]
    %v193 = vpack.c.bf16 %v191, %v191
    %195 = vrot.lane.b32.xlu0 %v193, 32
    %v196 = vpop.permute.xlu0 %195
    %v198 = vsel %vm58, %v196, 0
    %200 = vmatprep.subr.bf16.mxu0 0
    %201 = vmatpush1.bf16.msra.mxu0 %v54
    %202 = vmatprep.subr.bf16.mxu0 0
    %203 = vmatpush1.bf16.msra.mxu0 %v55
    %204 = vmatprep.subr.bf16.mxu0 0
    %205 = vmatpush1.bf16.msra.mxu0 0
    %206 = vmatprep.subr.bf16.mxu0 0
    %207 = vmatpush1.bf16.msra.mxu0 0
    %208 = vmatprep.subr.bf16.mxu0 0
    %209 = vmatpush1.bf16.msra.mxu0 0
    %210 = vmatprep.subr.bf16.mxu0 0
    %211 = vmatpush1.bf16.msra.mxu0 0
    %212 = vmatprep.subr.bf16.mxu0 0
    %213 = vmatpush1.bf16.msra.mxu0 0
    %214 = vmatprep.subr.bf16.mxu0 0
    %215 = vmatpush1.bf16.msra.mxu0 0
    %216 = vmatprep.subr.bf16.mxu0 0
    %217 = vmatpush1.bf16.msra.mxu0 0
    %218 = vmatprep.subr.bf16.mxu0 0
    %219 = vmatpush1.bf16.msra.mxu0 0
    %220 = vmatprep.subr.bf16.mxu0 0
    %221 = vmatpush1.bf16.msra.mxu0 0
    %222 = vmatprep.subr.bf16.mxu0 0
    %223 = vmatpush1.bf16.msra.mxu0 0
    %224 = vmatprep.subr.bf16.mxu0 0
    %225 = vmatpush1.bf16.msra.mxu0 0
    %226 = vmatprep.subr.bf16.mxu0 0
    %227 = vmatpush1.bf16.msra.mxu0 0
    %228 = vmatprep.subr.bf16.mxu0 0
    %229 = vmatpush1.bf16.msra.mxu0 0
    %230 = vmatprep.subr.bf16.mxu0 0
    %231 = vmatpush1.bf16.msra.mxu0 0
    %232 = vmatprep.mubr.bf16.mxu0 0
    %233 = vmatmul.mubr.bf16.gmra.mrb[0].mxu0 %v198
    %v234 = vpop.f32.mrb[0].mxu0
    %v235 = vadd.f32 0.0, %v234
    %v236 = vpop.f32.mrb[0].mxu0
    %v237 = vpop.f32.mrb[0].mxu0
    %v238 = vpop.f32.mrb[0].mxu0
    %239 = vdwg.mxu0
    %v240 = vadd.f32 %v192, %v235
    %v241 = vtanh.pop %v240
    %v242 = vmul.f32 %v39, %v241
    %v243 = vadd.f32 %v242, %v44
    %v244 = vmul.f32 %v243, %v185
    %246 = vrot.lane.b32.xlu0 %v243, 64
    %v247 = vpop.permute.xlu0 %246
    %v249 = vmul.f32 %v243, %v247
    %251 = vrot.lane.b32.xlu0 %v249, 32
    %v252 = vpop.permute.xlu0 %251
    %v254 = vadd.f32 %v244, %v252
    %v255 = vtanh.pop %v254
    %257 = vrot.lane.b32.xlu0 %v255, 64
    %v258 = vpop.permute.xlu0 %257
    %v260 = vmul.f32 %v243, %v258
    %v261 = vld [vmem:[%s0 + $0x18] sm:$0xff]
    %v262 = vpack.c.bf16 %v260, %v260
    %264 = vrot.lane.b32.xlu0 %v262, 32
    %v265 = vpop.permute.xlu0 %264
    %v267 = vsel %vm58, %v265, 0
    %269 = vmatprep.subr.bf16.mxu0 0
    %270 = vmatpush1.bf16.msra.mxu0 %v54
    %271 = vmatprep.subr.bf16.mxu0 0
    %272 = vmatpush1.bf16.msra.mxu0 %v55
    %273 = vmatprep.subr.bf16.mxu0 0
    %274 = vmatpush1.bf16.msra.mxu0 0
    %275 = vmatprep.subr.bf16.mxu0 0
    %276 = vmatpush1.bf16.msra.mxu0 0
    %277 = vmatprep.subr.bf16.mxu0 0
    %278 = vmatpush1.bf16.msra.mxu0 0
    %279 = vmatprep.subr.bf16.mxu0 0
    %280 = vmatpush1.bf16.msra.mxu0 0
    %281 = vmatprep.subr.bf16.mxu0 0
    %282 = vmatpush1.bf16.msra.mxu0 0
    %283 = vmatprep.subr.bf16.mxu0 0
    %284 = vmatpush1.bf16.msra.mxu0 0
    %285 = vmatprep.subr.bf16.mxu0 0
    %286 = vmatpush1.bf16.msra.mxu0 0
    %287 = vmatprep.subr.bf16.mxu0 0
    %288 = vmatpush1.bf16.msra.mxu0 0
    %289 = vmatprep.subr.bf16.mxu0 0
    %290 = vmatpush1.bf16.msra.mxu0 0
    %291 = vmatprep.subr.bf16.mxu0 0
    %292 = vmatpush1.bf16.msra.mxu0 0
    %293 = vmatprep.subr.bf16.mxu0 0
    %294 = vmatpush1.bf16.msra.mxu0 0
    %295 = vmatprep.subr.bf16.mxu0 0
    %296 = vmatpush1.bf16.msra.mxu0 0
    %297 = vmatprep.subr.bf16.mxu0 0
    %298 = vmatpush1.bf16.msra.mxu0 0
    %299 = vmatprep.subr.bf16.mxu0 0
    %300 = vmatpush1.bf16.msra.mxu0 0
    %301 = vmatprep.mubr.bf16.mxu0 0
    %302 = vmatmul.mubr.bf16.gmra.mrb[0].mxu0 %v267
    %v303 = vpop.f32.mrb[0].mxu0
    %v304 = vadd.f32 0.0, %v303
    %v305 = vpop.f32.mrb[0].mxu0
    %v306 = vpop.f32.mrb[0].mxu0
    %v307 = vpop.f32.mrb[0].mxu0
    %308 = vdwg.mxu0
    %v309 = vadd.f32 %v261, %v304
    %v310 = vtanh.pop %v309
    %v311 = vmul.f32 %v39, %v310
    %v312 = vadd.f32 %v311, %v44
    %v313 = vmul.f32 %v312, %v254
    %315 = vrot.lane.b32.xlu0 %v312, 64
    %v316 = vpop.permute.xlu0 %315
    %v318 = vmul.f32 %v312, %v316
    %320 = vrot.lane.b32.xlu0 %v318, 32
    %v321 = vpop.permute.xlu0 %320
    %v323 = vadd.f32 %v313, %v321
    %v324 = vtanh.pop %v323
    %326 = vrot.lane.b32.xlu0 %v324, 64
    %v327 = vpop.permute.xlu0 %326
    %v329 = vmul.f32 %v312, %v327
    %v330 = vld [vmem:[%s0 + $0x20] sm:$0xff]
    %v331 = vpack.c.bf16 %v329, %v329
    %333 = vrot.lane.b32.xlu0 %v331, 32
    %v334 = vpop.permute.xlu0 %333
    %v336 = vsel %vm58, %v334, 0
    %338 = vmatprep.subr.bf16.mxu0 0
    %339 = vmatpush1.bf16.msra.mxu0 %v54
    %340 = vmatprep.subr.bf16.mxu0 0
    %341 = vmatpush1.bf16.msra.mxu0 %v55
    %342 = vmatprep.subr.bf16.mxu0 0
    %343 = vmatpush1.bf16.msra.mxu0 0
    %344 = vmatprep.subr.bf16.mxu0 0
    %345 = vmatpush1.bf16.msra.mxu0 0
    %346 = vmatprep.subr.bf16.mxu0 0
    %347 = vmatpush1.bf16.msra.mxu0 0
    %348 = vmatprep.subr.bf16.mxu0 0
    %349 = vmatpush1.bf16.msra.mxu0 0
    %350 = vmatprep.subr.bf16.mxu0 0
    %351 = vmatpush1.bf16.msra.mxu0 0
    %352 = vmatprep.subr.bf16.mxu0 0
    %353 = vmatpush1.bf16.msra.mxu0 0
    %354 = vmatprep.subr.bf16.mxu0 0
    %355 = vmatpush1.bf16.msra.mxu0 0
    %356 = vmatprep.subr.bf16.mxu0 0
    %357 = vmatpush1.bf16.msra.mxu0 0
    %358 = vmatprep.subr.bf16.mxu0 0
    %359 = vmatpush1.bf16.msra.mxu0 0
    %360 = vmatprep.subr.bf16.mxu0 0
    %361 = vmatpush1.bf16.msra.mxu0 0
    %362 = vmatprep.subr.bf16.mxu0 0
    %363 = vmatpush1.bf16.msra.mxu0 0
    %364 = vmatprep.subr.bf16.mxu0 0
    %365 = vmatpush1.bf16.msra.mxu0 0
    %366 = vmatprep.subr.bf16.mxu0 0
    %367 = vmatpush1.bf16.msra.mxu0 0
    %368 = vmatprep.subr.bf16.mxu0 0
    %369 = vmatpush1.bf16.msra.mxu0 0
    %370 = vmatprep.mubr.bf16.mxu0 0
    %371 = vmatmul.mubr.bf16.gmra.mrb[0].mxu0 %v336
    %v372 = vpop.f32.mrb[0].mxu0
    %v373 = vadd.f32 0.0, %v372
    %v374 = vpop.f32.mrb[0].mxu0
    %v375 = vpop.f32.mrb[0].mxu0
    %v376 = vpop.f32.mrb[0].mxu0
    %377 = vdwg.mxu0
    %v378 = vadd.f32 %v330, %v373
    %v379 = vtanh.pop %v378
    %v380 = vmul.f32 %v39, %v379
    %v381 = vadd.f32 %v380, %v44
    %v382 = vmul.f32 %v381, %v323
    %384 = vrot.lane.b32.xlu0 %v381, 64
    %v385 = vpop.permute.xlu0 %384
    %v387 = vmul.f32 %v381, %v385
    %389 = vrot.lane.b32.xlu0 %v387, 32
    %v390 = vpop.permute.xlu0 %389
    %v392 = vadd.f32 %v382, %v390
    %v393 = vtanh.pop %v392
    %395 = vrot.lane.b32.xlu0 %v393, 64
    %v396 = vpop.permute.xlu0 %395
    %v398 = vmul.f32 %v381, %v396
    %v399 = vld [vmem:[%s0 + $0x28] sm:$0xff]
    %v400 = vpack.c.bf16 %v398, %v398
    %402 = vrot.lane.b32.xlu0 %v400, 32
    %v403 = vpop.permute.xlu0 %402
    %v405 = vsel %vm58, %v403, 0
    %407 = vmatprep.subr.bf16.mxu0 0
    %408 = vmatpush1.bf16.msra.mxu0 %v54
    %409 = vmatprep.subr.bf16.mxu0 0
    %410 = vmatpush1.bf16.msra.mxu0 %v55
    %411 = vmatprep.subr.bf16.mxu0 0
    %412 = vmatpush1.bf16.msra.mxu0 0
    %413 = vmatprep.subr.bf16.mxu0 0
    %414 = vmatpush1.bf16.msra.mxu0 0
    %415 = vmatprep.subr.bf16.mxu0 0
    %416 = vmatpush1.bf16.msra.mxu0 0
    %417 = vmatprep.subr.bf16.mxu0 0
    %418 = vmatpush1.bf16.msra.mxu0 0
    %419 = vmatprep.subr.bf16.mxu0 0
    %420 = vmatpush1.bf16.msra.mxu0 0
    %421 = vmatprep.subr.bf16.mxu0 0
    %422 = vmatpush1.bf16.msra.mxu0 0
    %423 = vmatprep.subr.bf16.mxu0 0
    %424 = vmatpush1.bf16.msra.mxu0 0
    %425 = vmatprep.subr.bf16.mxu0 0
    %426 = vmatpush1.bf16.msra.mxu0 0
    %427 = vmatprep.subr.bf16.mxu0 0
    %428 = vmatpush1.bf16.msra.mxu0 0
    %429 = vmatprep.subr.bf16.mxu0 0
    %430 = vmatpush1.bf16.msra.mxu0 0
    %431 = vmatprep.subr.bf16.mxu0 0
    %432 = vmatpush1.bf16.msra.mxu0 0
    %433 = vmatprep.subr.bf16.mxu0 0
    %434 = vmatpush1.bf16.msra.mxu0 0
    %435 = vmatprep.subr.bf16.mxu0 0
    %436 = vmatpush1.bf16.msra.mxu0 0
    %437 = vmatprep.subr.bf16.mxu0 0
    %438 = vmatpush1.bf16.msra.mxu0 0
    %439 = vmatprep.mubr.bf16.mxu0 0
    %440 = vmatmul.mubr.bf16.gmra.mrb[0].mxu0 %v405
    %v441 = vpop.f32.mrb[0].mxu0
    %v442 = vadd.f32 0.0, %v441
    %v443 = vpop.f32.mrb[0].mxu0
    %v444 = vpop.f32.mrb[0].mxu0
    %v445 = vpop.f32.mrb[0].mxu0
    %446 = vdwg.mxu0
    %v447 = vadd.f32 %v399, %v442
    %v448 = vtanh.pop %v447
    %v449 = vmul.f32 %v39, %v448
    %v450 = vadd.f32 %v449, %v44
    %v451 = vmul.f32 %v450, %v392
    %453 = vrot.lane.b32.xlu0 %v450, 64
    %v454 = vpop.permute.xlu0 %453
    %v456 = vmul.f32 %v450, %v454
    %458 = vrot.lane.b32.xlu0 %v456, 32
    %v459 = vpop.permute.xlu0 %458
    %v461 = vadd.f32 %v451, %v459
    %v462 = vtanh.pop %v461
    %464 = vrot.lane.b32.xlu0 %v462, 64
    %v465 = vpop.permute.xlu0 %464
    %v467 = vmul.f32 %v450, %v465
    %v468 = vld [vmem:[%s0 + $0x30] sm:$0xff]
    %v469 = vpack.c.bf16 %v467, %v467
    %471 = vrot.lane.b32.xlu0 %v469, 32
    %v472 = vpop.permute.xlu0 %471
    %v474 = vsel %vm58, %v472, 0
    %476 = vmatprep.subr.bf16.mxu0 0
    %477 = vmatpush1.bf16.msra.mxu0 %v54
    %478 = vmatprep.subr.bf16.mxu0 0
    %479 = vmatpush1.bf16.msra.mxu0 %v55
    %480 = vmatprep.subr.bf16.mxu0 0
    %481 = vmatpush1.bf16.msra.mxu0 0
    %482 = vmatprep.subr.bf16.mxu0 0
    %483 = vmatpush1.bf16.msra.mxu0 0
    %484 = vmatprep.subr.bf16.mxu0 0
    %485 = vmatpush1.bf16.msra.mxu0 0
    %486 = vmatprep.subr.bf16.mxu0 0
    %487 = vmatpush1.bf16.msra.mxu0 0
    %488 = vmatprep.subr.bf16.mxu0 0
    %489 = vmatpush1.bf16.msra.mxu0 0
    %490 = vmatprep.subr.bf16.mxu0 0
    %491 = vmatpush1.bf16.msra.mxu0 0
    %492 = vmatprep.subr.bf16.mxu0 0
    %493 = vmatpush1.bf16.msra.mxu0 0
    %494 = vmatprep.subr.bf16.mxu0 0
    %495 = vmatpush1.bf16.msra.mxu0 0
    %496 = vmatprep.subr.bf16.mxu0 0
    %497 = vmatpush1.bf16.msra.mxu0 0
    %498 = vmatprep.subr.bf16.mxu0 0
    %499 = vmatpush1.bf16.msra.mxu0 0
    %500 = vmatprep.subr.bf16.mxu0 0
    %501 = vmatpush1.bf16.msra.mxu0 0
    %502 = vmatprep.subr.bf16.mxu0 0
    %503 = vmatpush1.bf16.msra.mxu0 0
    %504 = vmatprep.subr.bf16.mxu0 0
    %505 = vmatpush1.bf16.msra.mxu0 0
    %506 = vmatprep.subr.bf16.mxu0 0
    %507 = vmatpush1.bf16.msra.mxu0 0
    %508 = vmatprep.mubr.bf16.mxu0 0
    %509 = vmatmul.mubr.bf16.gmra.mrb[0].mxu0 %v474
    %v510 = vpop.f32.mrb[0].mxu0
    %v511 = vadd.f32 0.0, %v510
    %v512 = vpop.f32.mrb[0].mxu0
    %v513 = vpop.f32.mrb[0].mxu0
    %v514 = vpop.f32.mrb[0].mxu0
    %515 = vdwg.mxu0
    %v516 = vadd.f32 %v468, %v511
    %v517 = vtanh.pop %v516
    %v518 = vmul.f32 %v39, %v517
    %v519 = vadd.f32 %v518, %v44
    %v520 = vmul.f32 %v519, %v461
    %522 = vrot.lane.b32.xlu0 %v519, 64
    %v523 = vpop.permute.xlu0 %522
    %v525 = vmul.f32 %v519, %v523
    %527 = vrot.lane.b32.xlu0 %v525, 32
    %v528 = vpop.permute.xlu0 %527
    %v530 = vadd.f32 %v520, %v528
    %v531 = vtanh.pop %v530
    %533 = vrot.lane.b32.xlu0 %v531, 64
    %v534 = vpop.permute.xlu0 %533
    %v536 = vmul.f32 %v519, %v534
    %v537 = vld [vmem:[%s0 + $0x38] sm:$0xff]
    %v538 = vpack.c.bf16 %v536, %v536
    %540 = vrot.lane.b32.xlu0 %v538, 32
    %v541 = vpop.permute.xlu0 %540
    %v543 = vsel %vm58, %v541, 0
    %545 = vmatprep.subr.bf16.mxu0 0
    %546 = vmatpush1.bf16.msra.mxu0 %v54
    %547 = vmatprep.subr.bf16.mxu0 0
    %548 = vmatpush1.bf16.msra.mxu0 %v55
    %549 = vmatprep.subr.bf16.mxu0 0
    %550 = vmatpush1.bf16.msra.mxu0 0
    %551 = vmatprep.subr.bf16.mxu0 0
    %552 = vmatpush1.bf16.msra.mxu0 0
    %553 = vmatprep.subr.bf16.mxu0 0
    %554 = vmatpush1.bf16.msra.mxu0 0
    %555 = vmatprep.subr.bf16.mxu0 0
    %556 = vmatpush1.bf16.msra.mxu0 0
    %557 = vmatprep.subr.bf16.mxu0 0
    %558 = vmatpush1.bf16.msra.mxu0 0
    %559 = vmatprep.subr.bf16.mxu0 0
    %560 = vmatpush1.bf16.msra.mxu0 0
    %561 = vmatprep.subr.bf16.mxu0 0
    %562 = vmatpush1.bf16.msra.mxu0 0
    %563 = vmatprep.subr.bf16.mxu0 0
    %564 = vmatpush1.bf16.msra.mxu0 0
    %565 = vmatprep.subr.bf16.mxu0 0
    %566 = vmatpush1.bf16.msra.mxu0 0
    %567 = vmatprep.subr.bf16.mxu0 0
    %568 = vmatpush1.bf16.msra.mxu0 0
    %569 = vmatprep.subr.bf16.mxu0 0
    %570 = vmatpush1.bf16.msra.mxu0 0
    %571 = vmatprep.subr.bf16.mxu0 0
    %572 = vmatpush1.bf16.msra.mxu0 0
    %573 = vmatprep.subr.bf16.mxu0 0
    %574 = vmatpush1.bf16.msra.mxu0 0
    %575 = vmatprep.subr.bf16.mxu0 0
    %576 = vmatpush1.bf16.msra.mxu0 0
    %577 = vmatprep.mubr.bf16.mxu0 0
    %578 = vmatmul.mubr.bf16.gmra.mrb[0].mxu0 %v543
    %v579 = vpop.f32.mrb[0].mxu0
    %v580 = vadd.f32 0.0, %v579
    %v581 = vpop.f32.mrb[0].mxu0
    %v582 = vpop.f32.mrb[0].mxu0
    %v583 = vpop.f32.mrb[0].mxu0
    %584 = vdwg.mxu0
    %v585 = vadd.f32 %v537, %v580
    %v586 = vtanh.pop %v585
    %v587 = vmul.f32 %v39, %v586
    %v588 = vadd.f32 %v587, %v44
    %v589 = vmul.f32 %v588, %v530
    %591 = vrot.lane.b32.xlu0 %v588, 64
    %v592 = vpop.permute.xlu0 %591
    %v594 = vmul.f32 %v588, %v592
    %596 = vrot.lane.b32.xlu0 %v594, 32
    %v597 = vpop.permute.xlu0 %596
    %v599 = vadd.f32 %v589, %v597
    %v600 = vtanh.pop %v599
    %602 = vrot.lane.b32.xlu0 %v600, 64
    %v603 = vpop.permute.xlu0 %602
    %v605 = vmul.f32 %v588, %v603
    %v606 = vpack.c.bf16 %v605, %v605
    %v607 = vld [vmem:[%s1 + $0x10] sm:$0xf]
    %v608 = vld [vmem:[%s1 + $0x14] sm:$0xf]
    %v609 = vld [vmem:[%s1 + $0x18] sm:$0xf]
    %v610 = vld [vmem:[%s1 + $0x1c] sm:$0xf]
    %v611 = vld [vmem:[%s2 + $0x2] sm:$0x1]
    %v612 = vlaneseq
    %v613 = vshrl.u32 %v612, 7
    %v614 = vsub.s32 0, %v613
    %v615 = vrot.slane %v611, %v614
    %617 = vrot.lane.b32.xlu0 %v606, 32
    %v618 = vpop.permute.xlu0 %617
    %v623 = vunpack.c.l.b16 %v607
    %v624 = vunpack.c.l.b16 %v608
    %v625 = vunpack.c.l.b16 %v609
    %v626 = vunpack.c.l.b16 %v610
    %v627 = vpack.c.b16 %v624, %v623
    %v628 = vpack.c.b16 %v626, %v625
    %v632 = vsel %vm58, %v618, 0
    %634 = vmatprep.subr.bf16.mxu0 0
    %635 = vmatpush1.bf16.msra.mxu0 %v627
    %636 = vmatprep.subr.bf16.mxu0 0
    %637 = vmatpush1.bf16.msra.mxu0 %v628
    %638 = vmatprep.subr.bf16.mxu0 0
    %639 = vmatpush1.bf16.msra.mxu0 0
    %640 = vmatprep.subr.bf16.mxu0 0
    %641 = vmatpush1.bf16.msra.mxu0 0
    %642 = vmatprep.subr.bf16.mxu0 0
    %643 = vmatpush1.bf16.msra.mxu0 0
    %644 = vmatprep.subr.bf16.mxu0 0
    %645 = vmatpush1.bf16.msra.mxu0 0
    %646 = vmatprep.subr.bf16.mxu0 0
    %647 = vmatpush1.bf16.msra.mxu0 0
    %648 = vmatprep.subr.bf16.mxu0 0
    %649 = vmatpush1.bf16.msra.mxu0 0
    %650 = vmatprep.subr.bf16.mxu0 0
    %651 = vmatpush1.bf16.msra.mxu0 0
    %652 = vmatprep.subr.bf16.mxu0 0
    %653 = vmatpush1.bf16.msra.mxu0 0
    %654 = vmatprep.subr.bf16.mxu0 0
    %655 = vmatpush1.bf16.msra.mxu0 0
    %656 = vmatprep.subr.bf16.mxu0 0
    %657 = vmatpush1.bf16.msra.mxu0 0
    %658 = vmatprep.subr.bf16.mxu0 0
    %659 = vmatpush1.bf16.msra.mxu0 0
    %660 = vmatprep.subr.bf16.mxu0 0
    %661 = vmatpush1.bf16.msra.mxu0 0
    %662 = vmatprep.subr.bf16.mxu0 0
    %663 = vmatpush1.bf16.msra.mxu0 0
    %664 = vmatprep.subr.bf16.mxu0 0
    %665 = vmatpush1.bf16.msra.mxu0 0
    %666 = vmatprep.mubr.bf16.mxu0 0
    %667 = vmatmul.mubr.bf16.gmra.mrb[0].mxu0 %v632
    %v668 = vpop.f32.mrb[0].mxu0
    %v669 = vadd.f32 %v615, %v668
    %v670 = vpop.f32.mrb[0].mxu0
    %v671 = vpop.f32.mrb[0].mxu0
    %v672 = vpop.f32.mrb[0].mxu0
    %673 = vdwg.mxu0
    %v674 = vmax.f32 %v669, 0.0
    %v675 = vpack.c.bf16 %v674, %v674
    %v676 = vld [vmem:[%s1 + $0x20] sm:$0xf]
    %v677 = vld [vmem:[%s1 + $0x24] sm:$0xf]
    %v678 = vld [vmem:[%s1 + $0x28] sm:$0xf]
    %v679 = vld [vmem:[%s1 + $0x2c] sm:$0xf]
    %v680 = vld [vmem:[%s2 + $0x3] sm:$0x1]
    %v681 = vlaneseq
    %v682 = vshrl.u32 %v681, 7
    %v683 = vsub.s32 0, %v682
    %v684 = vrot.slane %v680, %v683
    %v689 = vunpack.c.l.b16 %v676
    %v690 = vunpack.c.l.b16 %v677
    %v691 = vunpack.c.l.b16 %v678
    %v692 = vunpack.c.l.b16 %v679
    %v693 = vpack.c.b16 %v690, %v689
    %v694 = vpack.c.b16 %v692, %v691
    %v698 = vsel %vm58, %v675, 0
    %700 = vmatprep.subr.bf16.mxu0 0
    %701 = vmatpush1.bf16.msra.mxu0 %v693
    %702 = vmatprep.subr.bf16.mxu0 0
    %703 = vmatpush1.bf16.msra.mxu0 %v694
    %704 = vmatprep.subr.bf16.mxu0 0
    %705 = vmatpush1.bf16.msra.mxu0 0
    %706 = vmatprep.subr.bf16.mxu0 0
    %707 = vmatpush1.bf16.msra.mxu0 0
    %708 = vmatprep.subr.bf16.mxu0 0
    %709 = vmatpush1.bf16.msra.mxu0 0
    %710 = vmatprep.subr.bf16.mxu0 0
    %711 = vmatpush1.bf16.msra.mxu0 0
    %712 = vmatprep.subr.bf16.mxu0 0
    %713 = vmatpush1.bf16.msra.mxu0 0
    %714 = vmatprep.subr.bf16.mxu0 0
    %715 = vmatpush1.bf16.msra.mxu0 0
    %716 = vmatprep.subr.bf16.mxu0 0
    %717 = vmatpush1.bf16.msra.mxu0 0
    %718 = vmatprep.subr.bf16.mxu0 0
    %719 = vmatpush1.bf16.msra.mxu0 0
    %720 = vmatprep.subr.bf16.mxu0 0
    %721 = vmatpush1.bf16.msra.mxu0 0
    %722 = vmatprep.subr.bf16.mxu0 0
    %723 = vmatpush1.bf16.msra.mxu0 0
    %724 = vmatprep.subr.bf16.mxu0 0
    %725 = vmatpush1.bf16.msra.mxu0 0
    %726 = vmatprep.subr.bf16.mxu0 0
    %727 = vmatpush1.bf16.msra.mxu0 0
    %728 = vmatprep.subr.bf16.mxu0 0
    %729 = vmatpush1.bf16.msra.mxu0 0
    %730 = vmatprep.subr.bf16.mxu0 0
    %731 = vmatpush1.bf16.msra.mxu0 0
    %732 = vmatprep.mubr.bf16.mxu0 0
    %733 = vmatmul.mubr.bf16.gmra.mrb[0].mxu0 %v698
    %v734 = vpop.f32.mrb[0].mxu0
    %v735 = vadd.f32 %v684, %v734
    %v736 = vpop.f32.mrb[0].mxu0
    %v737 = vpop.f32.mrb[0].mxu0
    %v738 = vpop.f32.mrb[0].mxu0
    %739 = vdwg.mxu0
    %v740 = vtanh.pop %v735
    %v741 = vadd.f32 %v735, 1e-05
    %v742 = vxor.u32 %v741, 2147483648
    %v743 = vmul.f32 %v742, 1.442695
    %v744 = vpow.pop %v743
    %v745 = vadd.f32 %v744, 1.0
    %v746 = vrcp.pop %v745
    %v747 = vmul.f32 1.0, %v746
    %s748 = sld [smem:[#allocation2]]
    %v749 = vstv %s748
    %v750 = vmul.f32 %v747, %v749
    %752 = vrot.lane.b32.xlu0 %v750, 127
    %v753 = vpop.permute.xlu0 %752
    %v755 = vadd.f32 %v740, %v753
    %v756 = vmax.f32 %v755, -1.0
    %v757 = vmin.f32 %v756, 1.0
    %v758 = vsub.f32 %v757, %v740
    %760 = vrot.lane.b32.xlu0 %v747, 127
    %v761 = vpop.permute.xlu0 %760
    %v763 = vrcp.pop %v761
    %v764 = vmul.f32 %v758, %v763
    %v765 = vmul.f32 %v764, %v764
    %v766 = vmul.f32 %v765, -0.5
    %v767 = vlog2.pop %v747
    %v768 = vmul.f32 %v767, 0.6931472
    %770 = vrot.lane.b32.xlu0 %v768, 127
    %v771 = vpop.permute.xlu0 %770
    %v773 = vsub.f32 %v766, %v771
    %v774 = vsub.f32 %v773, 0.9189385
    %v775 = vld [vmem:[%s2 + $0x5] sm:$0x1]
    %777 = vset.pattern.permute.xlu0 0
    %778 = vperm.xlu0 %777, %v757
    %v779 = vpop.permute.xlu0 %778
    %v781 = vlaneseq
    %v782 = vshrl.u32 %v781, 7
    %v783 = vsub.s32 0, %v782
    %v784 = vrot.slane %v775, %v783
    %v785 = vmul.f32 %v779, %v784
    %787 = vrot.lane.b32.xlu0 %v785, 32
    %v788 = vpop.permute.xlu0 %787
    %v790 = vadd.f32 %v669, %v788
    %v791 = vmax.f32 %v790, 0.0
    %v792 = vpack.c.bf16 %v791, %v791
    %v793 = vld [vmem:[%s1 + $0x30] sm:$0xf]
    %v794 = vld [vmem:[%s1 + $0x34] sm:$0xf]
    %v795 = vld [vmem:[%s1 + $0x38] sm:$0xf]
    %v796 = vld [vmem:[%s1 + $0x3c] sm:$0xf]
    %v797 = vld [vmem:[%s2 + $0x4] sm:$0x1]
    %v798 = vlaneseq
    %v799 = vshrl.u32 %v798, 7
    %v800 = vsub.s32 0, %v799
    %v801 = vrot.slane %v797, %v800
    %803 = vrot.lane.b32.xlu0 %v792, 96
    %v804 = vpop.permute.xlu0 %803
    %v809 = vunpack.c.l.b16 %v793
    %v810 = vunpack.c.l.b16 %v794
    %v811 = vunpack.c.l.b16 %v795
    %v812 = vunpack.c.l.b16 %v796
    %v813 = vpack.c.b16 %v810, %v809
    %v814 = vpack.c.b16 %v812, %v811
    %v818 = vsel %vm58, %v804, 0
    %820 = vmatprep.subr.bf16.mxu0 0
    %821 = vmatpush1.bf16.msra.mxu0 %v813
    %822 = vmatprep.subr.bf16.mxu0 0
    %823 = vmatpush1.bf16.msra.mxu0 %v814
    %824 = vmatprep.subr.bf16.mxu0 0
    %825 = vmatpush1.bf16.msra.mxu0 0
    %826 = vmatprep.subr.bf16.mxu0 0
    %827 = vmatpush1.bf16.msra.mxu0 0
    %828 = vmatprep.subr.bf16.mxu0 0
    %829 = vmatpush1.bf16.msra.mxu0 0
    %830 = vmatprep.subr.bf16.mxu0 0
    %831 = vmatpush1.bf16.msra.mxu0 0
    %832 = vmatprep.subr.bf16.mxu0 0
    %833 = vmatpush1.bf16.msra.mxu0 0
    %834 = vmatprep.subr.bf16.mxu0 0
    %835 = vmatpush1.bf16.msra.mxu0 0
    %836 = vmatprep.subr.bf16.mxu0 0
    %837 = vmatpush1.bf16.msra.mxu0 0
    %838 = vmatprep.subr.bf16.mxu0 0
    %839 = vmatpush1.bf16.msra.mxu0 0
    %840 = vmatprep.subr.bf16.mxu0 0
    %841 = vmatpush1.bf16.msra.mxu0 0
    %842 = vmatprep.subr.bf16.mxu0 0
    %843 = vmatpush1.bf16.msra.mxu0 0
    %844 = vmatprep.subr.bf16.mxu0 0
    %845 = vmatpush1.bf16.msra.mxu0 0
    %846 = vmatprep.subr.bf16.mxu0 0
    %847 = vmatpush1.bf16.msra.mxu0 0
    %848 = vmatprep.subr.bf16.mxu0 0
    %849 = vmatpush1.bf16.msra.mxu0 0
    %850 = vmatprep.subr.bf16.mxu0 0
    %851 = vmatpush1.bf16.msra.mxu0 0
    %852 = vmatprep.mubr.bf16.mxu0 0
    %853 = vmatmul.mubr.bf16.gmra.mrb[0].mxu0 %v818
    %v854 = vpop.f32.mrb[0].mxu0
    %v855 = vadd.f32 %v801, %v854
    %v856 = vpop.f32.mrb[0].mxu0
    %v857 = vpop.f32.mrb[0].mxu0
    %v858 = vpop.f32.mrb[0].mxu0
    %859 = vdwg.mxu0
    %v860 = vtanh.pop %v855
    %v861 = vadd.f32 %v855, 1e-05
    %v862 = vmax.f32 %v861, 0.0
    %vm863 = vcmp.ne.f32.partialorder %v861, %v861
    %v864 = vadd.f32 %v861, 0.0
    %v865 = vand.u32 2147483647, %v861
    %v866 = vsub.f32 0.0, %v865
    %v867 = vmul.f32 %v866, 1.442695
    %v868 = vpow.pop %v867
    %v869 = vadd.f32 %v868, 1.0
    %v870 = vlog2.pop %v869
    %v871 = vmul.f32 %v870, 0.6931472
    %v872 = vmul.f32 -0.5, %v868
    %v873 = vadd.f32 %v872, 1.0
    %v874 = vmul.f32 %v873, %v868
    %v875 = vand.u32 2147483647, %v868
    %vm876 = vcmp.lt.f32.partialorder %v875, 0.0004427343
    %v877 = vsel %vm876, %v874, %v871
    %v878 = vadd.f32 %v862, %v877
    %v879 = vsel %vm863, %v864, %v878
    %s880 = sld [smem:[#allocation2 + $0x1]]
    %v881 = vstv %s880
    %v882 = vmul.f32 %v879, %v881
    %884 = vrot.lane.b32.xlu0 %v882, 127
    %v885 = vpop.permute.xlu0 %884
    %v887 = vadd.f32 %v860, %v885
    %v888 = vmax.f32 %v887, -1.0
    %v889 = vmin.f32 %v888, 1.0
    %890 = vrot.lane.b32.xlu0 %v757, 2
    %v891 = vpop.permute.xlu0 %890
    %894 = vrot.lane.b32.xlu0 %v774, 3
    %v895 = vpop.permute.xlu0 %894
    %898 = vrot.lane.b32.xlu0 %v860, 4
    %v899 = vpop.permute.xlu0 %898
    %902 = vrot.lane.b32.xlu0 %v879, 4
    %v903 = vpop.permute.xlu0 %902
    %906 = vrot.lane.b32.xlu0 %v889, 6
    %v907 = vpop.permute.xlu0 %906
    %vm909 = vcmask 7168
    %v910 = vsel %vm909, %v740, %v747
    %vm911 = vcmask 15360
    %v912 = vsel %vm911, %v910, %v891
    %vm913 = vcmask 23552
    %v914 = vsel %vm913, %v912, %v895
    %vm915 = vcmask 31744
    %v916 = vsel %vm915, %v914, %v899
    %vm917 = vcmask 39936
    %v918 = vsel %vm917, %v916, %v903
    %vm919 = vcmask 48128
    %v920 = vsel %vm919, %v918, %v907
    %vm921 = vcmask 56320
    %922 = vst.msk [vmem:[%s4] sm:$0xff] %vm921, %v920
    // Predicated region
    $region22: #{_actor_forward_impl.1} parent=1 // pred_check
      _
    $region23: #{_actor_forward_impl.1} parent=1 // pred_check_branch
      %924 = sbr.rel (0) target = $region25
    $region24: #{_actor_forward_impl.1} parent=1 // pred_region
      _
    $region25: #{_actor_forward_impl.1} parent=1 // pred_fallthru
      _
    // Predicated region
    $region26: #{_actor_forward_impl.1} parent=1 // pred_check
      _
    $region27: #{_actor_forward_impl.1} parent=1 // pred_check_branch
      %926 = sbr.rel (0) target = $region29
    $region28: #{_actor_forward_impl.1} parent=1 // pred_region
      _
    $region29: #{_actor_forward_impl.1} parent=1 // pred_fallthru
      _
    %927 = vsyncpa [#allocation3], 1

</llo_original>
